<compile_context>
chip_gen: v5e
topology: v5e:2x2
jax: 0.10.0
libtpu: 0.0.40
codegen_flags: <defaults>
</compile_context>

<pallas_src>
import jax
import jax.numpy as jnp
from jax.experimental import pallas as pl
from jax.experimental.pallas import tpu as pltpu


def _round_up(x, m):
    return (x + m - 1) // m * m


def _pad_to(a, shape):
    """Zero-pad `a` up to `shape` (no-op if already that shape)."""
    pads = [(0, t - s) for s, t in zip(a.shape, shape)]
    if not any(p[1] for p in pads):
        return a
    return jnp.pad(a, pads)


def _fold_conv_bn(w, gamma, beta, mean, var, eps=1e-5):
    """Fold a bias-free 1x1 conv (channels-last (Cin, Cout)) + BN into (W', b')."""
    scale = gamma / jnp.sqrt(var + eps)          # (Cout,)
    w_f = w * scale[None, :]                     # (Cin, Cout)
    b_f = (beta - mean * scale)[None, :]         # (1, Cout)
    return w_f.astype(jnp.float32), b_f.astype(jnp.float32)


def _oab_kernel(x_ref, k_ref, vt_ref, mask_ref,
                w1pt_ref, b1p_ref, w2pt_ref, b2p_ref,
                wut_ref, bu_ref, o_ref):
    """Channels-major body: every ref is (rows, T) with T = HW tile on lanes."""
    relu = lambda t: jnp.maximum(t, 0.0)
    bf16 = jnp.bfloat16
    f32 = jnp.float32

    x = x_ref[0].astype(bf16)                                   # (C, T)

    # f_pixel: two folded (1x1 conv -> BN -> ReLU).  The key_channels**-0.5
    # softmax scale is already folded into w2pt / b2p.
    q = relu(jnp.dot(w1pt_ref[...], x, preferred_element_type=f32)
             + b1p_ref[...])                                    # (K, T)
    q = relu(jnp.dot(w2pt_ref[...], q.astype(bf16),
                     preferred_element_type=f32) + b2p_ref[...])

    # attention logits against the per-batch proxy keys k (M, K)
    sim = jnp.dot(k_ref[0], q.astype(bf16),
                  preferred_element_type=f32)                   # (M, T)
    sim = sim + mask_ref[...]                                   # mask padded proxies
    sim = sim - jnp.max(sim, axis=0, keepdims=True)
    e = jnp.exp(sim)
    attn = e * pl.reciprocal(jnp.sum(e, axis=0, keepdims=True), approx=True)

    ctx = jnp.dot(vt_ref[0], attn.astype(bf16),
                  preferred_element_type=f32)                   # (K, T)

    # f_up: folded (1x1 conv -> BN -> ReLU) back to in_channels
    out = relu(jnp.dot(wut_ref[...], ctx.astype(bf16),
                       preferred_element_type=f32) + bu_ref[...])   # (C, T)
    o_ref[0] = out.astype(o_ref.dtype)


def _choose_tile(hw, n, c, k_pad, m_pad, in_bytes, out_bytes, tile_hw):
    """Pick the HW (lane) tile and a vmem_limit from the real footprint.

    Generation-aware: capped against the physical VMEM of the current chip
    (64 MiB on v7x, 128 MiB on v5e/v6e) so double-buffering stays alive.
    """
    try:
        vmem_cap = int(pltpu.get_tpu_info().vmem_capacity_bytes)
    except Exception:  # pragma: no cover - conservative fallback
        vmem_cap = 64 * 1024 * 1024          # assume the smallest (v7x)

    # VMEM bytes per token column: double-buffered x/out tiles + bf16 x copy
    # + f32 intermediates (q, q2, sim/e/attn, ctx, out-f32).
    per_tok = (2 * c * in_bytes + 2 * c * out_bytes + 2 * c
               + 4 * (3 * k_pad + 3 * m_pad + c))
    const = (2 * 2 * m_pad * k_pad * 2                       # k, v^T (bf16, 2 bufs)
             + 2 * (k_pad * c + k_pad * k_pad + c * k_pad)   # resident weights (bf16)
             + 4 * (2 * k_pad + c + m_pad))                  # biases + mask (f32)
    budget = int(vmem_cap * 0.45)

    tile = 2048 if tile_hw is None else int(tile_hw)
    tile = max(128, min(_round_up(tile, 128), _round_up(hw, 128)))
    while tile > 128 and const + per_tok * tile > budget:
        tile -= 128
    if tile_hw is None:
        # keep >= ~4 pipelined steps per TensorCore (2 cores on v7x)
        while tile > 256 and n * ((hw + tile - 1) // tile) < 8:
            tile //= 2
        tile = max(128, _round_up(tile, 128))

    hw_pad = _round_up(hw, tile)
    footprint = const + per_tok * tile
    vmem_limit = int(min(vmem_cap * 0.9, max(2 * footprint, 16 * 1024 * 1024)))
    return tile, hw_pad, vmem_limit


def object_attention_block(x_nchw, proxy_nchw, params, *, key_channels,
                           scale=1, tile_hw=None):
    """Pallas implementation of _ObjectAttentionBlock.forward (scale=1)."""
    # TODO(synk): scale>1 path (MaxPool2d downsample + bilinear upsample) not implemented.
    assert scale == 1

    n, c, h, w = x_nchw.shape
    _, _, hp, wp = proxy_nchw.shape
    hw, m = h * w, hp * wp

    (w1p, b1p, w2p, b2p, w1o, b1o, w2o, b2o, wd, bd, wu, bu) = params
    relu = lambda t: jnp.maximum(t, 0.0)
    bf16 = jnp.bfloat16

    # ---- tiny proxy / object path: computed once, outside the kernel (f32) ----
    p = jnp.transpose(proxy_nchw, (0, 2, 3, 1)).reshape(n, m, c).astype(jnp.float32)
    k_feat = relu(relu(p @ w1o + b1o) @ w2o + b2o)   # (n, m, K)  keys
    v_feat = relu(p @ wd + bd)                       # (n, m, K)  values

    # ---- fold softmax scale into second f_pixel conv (positive scale commutes with ReLU)
    s = float(key_channels) ** -0.5
    w2p_s, b2p_s = w2p * s, b2p * s

    # Only sublane (x8) padding on the tiny proxy/weight tensors; C and HW of
    # the activation stream are NOT padded (no extra HBM passes).
    k_pad = _round_up(key_channels, 8)
    m_pad = _round_up(m, 8)

    kk = _pad_to(k_feat, (n, m_pad, k_pad)).astype(bf16)                         # (n, M, K)
    vt = _pad_to(jnp.transpose(v_feat, (0, 2, 1)), (n, k_pad, m_pad)).astype(bf16)  # (n, K, M)

    # weights in channels-major (transposed) form
    w1pt = _pad_to(w1p.T, (k_pad, c)).astype(bf16)          # (K, C)
    w2pt = _pad_to(w2p_s.T, (k_pad, k_pad)).astype(bf16)    # (K, K)  scale folded
    wut = _pad_to(wu.T, (c, k_pad)).astype(bf16)            # (C, K)
    b1pc = _pad_to(b1p.reshape(key_channels, 1), (k_pad, 1)).astype(jnp.float32)
    b2pc = _pad_to(b2p_s.reshape(key_channels, 1), (k_pad, 1)).astype(jnp.float32)
    buc = bu.reshape(c, 1).astype(jnp.float32)
    # additive mask column for zero-padded proxy rows (all zeros if m_pad == m)
    mask = jnp.concatenate(
        [jnp.zeros((m, 1), jnp.float32),
         jnp.full((m_pad - m, 1), -1e30, jnp.float32)], axis=0)

    in_b = jnp.dtype(x_nchw.dtype).itemsize
    out_b = in_b
    tile, hw_pad, vmem_limit = _choose_tile(hw, n, c, k_pad, m_pad,
                                            in_b, out_b, tile_hw)

    # channels-major view of x: a FREE reshape of NCHW (no transpose/pad/cast pass)
    x_cm = x_nchw.reshape(n, c, hw)
    if hw_pad != hw:
        x_cm = jnp.pad(x_cm, ((0, 0), (0, 0), (0, hw_pad - hw)))

    # Batch stays the OUTER grid axis: kk / vt block indices are unchanged
    # across the inner HW loop, so they are DMA'd once per batch element.
    grid = (n, hw_pad // tile)

    const = lambda arr: pl.BlockSpec(arr.shape, lambda b, t: (0,) * arr.ndim)
    per_batch = lambda shp: pl.BlockSpec((1,) + shp, lambda b, t: (b, 0, 0))

    flops = 2 * n * hw_pad * (2 * c * k_pad + k_pad * k_pad + 2 * k_pad * m_pad)
    bytes_acc = (n * hw_pad * c * (in_b + out_b)
                 + 2 * n * m_pad * k_pad * 2
                 + 2 * (k_pad * c + k_pad * k_pad + c * k_pad))
    cost = pl.CostEstimate(flops=int(flops),
                           transcendentals=int(n * hw_pad * m_pad),
                           bytes_accessed=int(bytes_acc))

    out = pl.pallas_call(
        _oab_kernel,
        out_shape=jax.ShapeDtypeStruct((n, c, hw_pad), x_nchw.dtype),
        grid=grid,
        in_specs=[
            pl.BlockSpec((1, c, tile), lambda b, t: (b, 0, t)),   # x (channels-major)
            per_batch((m_pad, k_pad)),                             # proxy keys   k
            per_batch((k_pad, m_pad)),                             # proxy values v^T
            const(mask),
            const(w1pt), const(b1pc),
            const(w2pt), const(b2pc),
            const(wut), const(buc),
        ],
        out_specs=pl.BlockSpec((1, c, tile), lambda b, t: (b, 0, t)),
        compiler_params=pltpu.CompilerParams(
            dimension_semantics=("parallel", "parallel"),
            vmem_limit_bytes=int(vmem_limit)),
        cost_estimate=cost,
    )(x_cm, kk, vt, mask, w1pt, b1pc, w2pt, b2pc, wut, buc)

    if hw_pad != hw:
        out = out[:, :, :hw]
    return out.reshape(n, c, h, w)


def _reference(x_nchw, proxy_nchw, params, *, key_channels):
    """Plain-JAX f32 reference of the same folded computation (for validation)."""
    n, c, h, w = x_nchw.shape
    _, _, hp, wp = proxy_nchw.shape
    x = jnp.transpose(x_nchw, (0, 2, 3, 1)).reshape(n, h * w, c)
    p = jnp.transpose(proxy_nchw, (0, 2, 3, 1)).reshape(n, hp * wp, c)
    (w1p, b1p, w2p, b2p, w1o, b1o, w2o, b2o, wd, bd, wu, bu) = params
    relu = lambda t: jnp.maximum(t, 0.0)
    q = relu(relu(x @ w1p + b1p) @ w2p + b2p)
    k = relu(relu(p @ w1o + b1o) @ w2o + b2o)
    v = relu(p @ wd + bd)
    sim = jnp.einsum("nqk,nmk->nqm", q, k) * (float(key_channels) ** -0.5)
    attn = jax.nn.softmax(sim, axis=-1)
    ctx = jnp.einsum("nqm,nmk->nqk", attn, v)
    out = relu(ctx @ wu + bu)
    return jnp.transpose(out.reshape(n, h, w, c), (0, 3, 1, 2))


def _make_params(key, in_channels, key_channels):
    """Deterministic synthetic params: 1x1 conv weights + BN stats, BN folded in."""

    def conv_bn(k, cin, cout):
        wk, gk, bk, mk, vk = jax.random.split(k, 5)
        wconv = jax.random.normal(wk, (cin, cout), jnp.float32) * 0.2
        gamma = 1.0 + 0.1 * jax.random.normal(gk, (cout,), jnp.float32)
        beta = 0.1 * jax.random.normal(bk, (cout,), jnp.float32)
        mean = 0.1 * jax.random.normal(mk, (cout,), jnp.float32)
        var = jnp.abs(jax.random.normal(vk, (cout,), jnp.float32)) + 0.5
        return _fold_conv_bn(wconv, gamma, beta, mean, var)

    ks = jax.random.split(key, 6)
    w1p, b1p = conv_bn(ks[0], in_channels, key_channels)    # f_pixel[0]
    w2p, b2p = conv_bn(ks[1], key_channels, key_channels)   # f_pixel[1]
    w1o, b1o = conv_bn(ks[2], in_channels, key_channels)    # f_object[0]
    w2o, b2o = conv_bn(ks[3], key_channels, key_channels)   # f_object[1]
    wd, bd = conv_bn(ks[4], in_channels, key_channels)      # f_down
    wu, bu = conv_bn(ks[5], key_channels, in_channels)      # f_up
    return (w1p, b1p, w2p, b2p, w1o, b1o, w2o, b2o, wd, bd, wu, bu)


if __name__ == "__main__":
    N, C, K = 2, 32, 32
    H = W = 16          # pixel feature map  -> HW = 256 tokens
    Hp, Wp = 8, 1       # "proxy" / object regions (e.g. num_classes x 1) -> M = 8

    root = jax.random.PRNGKey(0)
    kx, kp, kparams = jax.random.split(root, 3)
    x = jax.random.normal(kx, (N, C, H, W), jnp.float32)
    proxy = jax.random.normal(kp, (N, C, Hp, Wp), jnp.float32)
    params = _make_params(kparams, C, K)

    ref = _reference(x, proxy, params, key_channels=K)

    # tile_hw=128 -> grid (2, 2): exercises the tiled HW path.
    out = object_attention_block(x, proxy, params, key_channels=K, scale=1,
                                 tile_hw=128)
    out = jax.block_until_ready(out)
    assert out.shape == (N, C, H, W), out.shape
    # bf16 operands inside the kernel -> loose tolerance vs the f32 reference
    assert jnp.allclose(out, ref, atol=1e-1, rtol=1e-1), "mismatch vs JAX reference (tiled)"

    # default (auto tile / auto vmem) path
    out2 = object_attention_block(x, proxy, params, key_channels=K, scale=1)
    out2 = jax.block_until_ready(out2)
    assert jnp.allclose(out2, ref, atol=1e-1, rtol=1e-1), "mismatch vs JAX reference (auto)"

    print("KERNEL_OK")
</pallas_src>

<mosaic_0001>
module attributes {stable_mosaic.version = 11 : i64} {
  func.func @_oab_kernel(%arg0: i32, %arg1: i32, %arg2: memref<1x32x128xf32, #tpu.memory_space<vmem>>, %arg3: memref<1x8x32xbf16, #tpu.memory_space<vmem>>, %arg4: memref<1x32x8xbf16, #tpu.memory_space<vmem>>, %arg5: memref<8x1xf32, #tpu.memory_space<vmem>>, %arg6: memref<32x32xbf16, #tpu.memory_space<vmem>>, %arg7: memref<32x1xf32, #tpu.memory_space<vmem>>, %arg8: memref<32x32xbf16, #tpu.memory_space<vmem>>, %arg9: memref<32x1xf32, #tpu.memory_space<vmem>>, %arg10: memref<32x32xbf16, #tpu.memory_space<vmem>>, %arg11: memref<32x1xf32, #tpu.memory_space<vmem>>, %arg12: memref<1x32x128xf32, #tpu.memory_space<vmem>>) attributes {dimension_semantics = [#tpu.dimension_semantics<parallel>, #tpu.dimension_semantics<parallel>], iteration_bounds = array<i64: 2, 2>, scalar_prefetch = 0 : i64, scratch_operands = 0 : i64, tpu.core_type = #tpu.core_type<tc>, window_params = [{transform_indices = @transform_0, window_bounds = array<i64: 1, 32, 128>}, {transform_indices = @transform_1, window_bounds = array<i64: 1, 8, 32>}, {transform_indices = @transform_2, window_bounds = array<i64: 1, 32, 8>}, {pipeline_mode = #tpu.pipeline_mode<synchronous>, transform_indices = @transform_3, window_bounds = array<i64: 8, 1>}, {pipeline_mode = #tpu.pipeline_mode<synchronous>, transform_indices = @transform_4, window_bounds = array<i64: 32, 32>}, {pipeline_mode = #tpu.pipeline_mode<synchronous>, transform_indices = @transform_5, window_bounds = array<i64: 32, 1>}, {pipeline_mode = #tpu.pipeline_mode<synchronous>, transform_indices = @transform_6, window_bounds = array<i64: 32, 32>}, {pipeline_mode = #tpu.pipeline_mode<synchronous>, transform_indices = @transform_7, window_bounds = array<i64: 32, 1>}, {pipeline_mode = #tpu.pipeline_mode<synchronous>, transform_indices = @transform_8, window_bounds = array<i64: 32, 32>}, {pipeline_mode = #tpu.pipeline_mode<synchronous>, transform_indices = @transform_9, window_bounds = array<i64: 32, 1>}, {transform_indices = @transform_10, window_bounds = array<i64: 1, 32, 128>}]} {
    %c0 = arith.constant 0 : index
    %c0_0 = arith.constant 0 : index
    %c0_1 = arith.constant 0 : index
    %0 = vector.load %arg2[%c0, %c0_0, %c0_1] : memref<1x32x128xf32, #tpu.memory_space<vmem>>, vector<1x32x128xf32>
    %1 = vector.shape_cast %0 : vector<1x32x128xf32> to vector<32x128xf32>
    %2 = arith.truncf %1 : vector<32x128xf32> to vector<32x128xbf16>
    %c0_2 = arith.constant 0 : index
    %c0_3 = arith.constant 0 : index
    %3 = vector.load %arg6[%c0_2, %c0_3] : memref<32x32xbf16, #tpu.memory_space<vmem>>, vector<32x32xbf16>
    %cst = arith.constant dense<0.000000e+00> : vector<32x128xf32>
    %4 = tpu.matmul %3, %2, %cst {dimension_numbers = #tpu.dot_dimension_numbers<[1], [0], [0], [1], [0, 0, 1, 1], [], []>} : vector<32x32xbf16>, vector<32x128xbf16>, vector<32x128xf32> -> vector<32x128xf32>
    %c0_4 = arith.constant 0 : index
    %c0_5 = arith.constant 0 : index
    %5 = vector.load %arg7[%c0_4, %c0_5] : memref<32x1xf32, #tpu.memory_space<vmem>>, vector<32x1xf32>
    %6 = vector.broadcast %5 : vector<32x1xf32> to vector<32x128xf32>
    %7 = arith.addf %4, %6 : vector<32x128xf32>
    %cst_6 = arith.constant 0.000000e+00 : f32
    %8 = vector.broadcast %cst_6 : f32 to vector<32x128xf32>
    %9 = arith.maximumf %7, %8 : vector<32x128xf32>
    %c0_7 = arith.constant 0 : index
    %c0_8 = arith.constant 0 : index
    %10 = vector.load %arg8[%c0_7, %c0_8] : memref<32x32xbf16, #tpu.memory_space<vmem>>, vector<32x32xbf16>
    %11 = arith.truncf %9 : vector<32x128xf32> to vector<32x128xbf16>
    %cst_9 = arith.constant dense<0.000000e+00> : vector<32x128xf32>
    %12 = tpu.matmul %10, %11, %cst_9 {dimension_numbers = #tpu.dot_dimension_numbers<[1], [0], [0], [1], [0, 0, 1, 1], [], []>} : vector<32x32xbf16>, vector<32x128xbf16>, vector<32x128xf32> -> vector<32x128xf32>
    %c0_10 = arith.constant 0 : index
    %c0_11 = arith.constant 0 : index
    %13 = vector.load %arg9[%c0_10, %c0_11] : memref<32x1xf32, #tpu.memory_space<vmem>>, vector<32x1xf32>
    %14 = vector.broadcast %13 : vector<32x1xf32> to vector<32x128xf32>
    %15 = arith.addf %12, %14 : vector<32x128xf32>
    %cst_12 = arith.constant 0.000000e+00 : f32
    %16 = vector.broadcast %cst_12 : f32 to vector<32x128xf32>
    %17 = arith.maximumf %15, %16 : vector<32x128xf32>
    %c0_13 = arith.constant 0 : index
    %c0_14 = arith.constant 0 : index
    %c0_15 = arith.constant 0 : index
    %18 = vector.load %arg3[%c0_13, %c0_14, %c0_15] : memref<1x8x32xbf16, #tpu.memory_space<vmem>>, vector<1x8x32xbf16>
    %19 = vector.shape_cast %18 : vector<1x8x32xbf16> to vector<8x32xbf16>
    %20 = arith.truncf %17 : vector<32x128xf32> to vector<32x128xbf16>
    %cst_16 = arith.constant dense<0.000000e+00> : vector<8x128xf32>
    %21 = tpu.matmul %19, %20, %cst_16 {dimension_numbers = #tpu.dot_dimension_numbers<[1], [0], [0], [1], [0, 0, 1, 1], [], []>} : vector<8x32xbf16>, vector<32x128xbf16>, vector<8x128xf32> -> vector<8x128xf32>
    %c0_17 = arith.constant 0 : index
    %c0_18 = arith.constant 0 : index
    %22 = vector.load %arg5[%c0_17, %c0_18] : memref<8x1xf32, #tpu.memory_space<vmem>>, vector<8x1xf32>
    %23 = vector.broadcast %22 : vector<8x1xf32> to vector<8x128xf32>
    %24 = arith.addf %21, %23 : vector<8x128xf32>
    %cst_19 = arith.constant dense<0xFF800000> : vector<128xf32>
    %25 = vector.multi_reduction <maximumf>, %24, %cst_19 [0] : vector<8x128xf32> to vector<128xf32>
    %26 = vector.shape_cast %25 : vector<128xf32> to vector<1x128xf32>
    %27 = vector.broadcast %26 : vector<1x128xf32> to vector<8x128xf32>
    %28 = arith.subf %24, %27 : vector<8x128xf32>
    %29 = math.exp %28 : vector<8x128xf32>
    %cst_20 = arith.constant dense<0.000000e+00> : vector<128xf32>
    %30 = vector.multi_reduction <add>, %29, %cst_20 [0] : vector<8x128xf32> to vector<128xf32>
    %31 = vector.shape_cast %30 : vector<128xf32> to vector<1x128xf32>
    %32 = tpu.reciprocal %31 {approx = true} : vector<1x128xf32> -> vector<1x128xf32>
    %33 = vector.broadcast %32 : vector<1x128xf32> to vector<8x128xf32>
    %34 = arith.mulf %29, %33 : vector<8x128xf32>
    %c0_21 = arith.constant 0 : index
    %c0_22 = arith.constant 0 : index
    %c0_23 = arith.constant 0 : index
    %35 = vector.load %arg4[%c0_21, %c0_22, %c0_23] : memref<1x32x8xbf16, #tpu.memory_space<vmem>>, vector<1x32x8xbf16>
    %36 = vector.shape_cast %35 : vector<1x32x8xbf16> to vector<32x8xbf16>
    %37 = arith.truncf %34 : vector<8x128xf32> to vector<8x128xbf16>
    %cst_24 = arith.constant dense<0.000000e+00> : vector<32x128xf32>
    %38 = tpu.matmul %36, %37, %cst_24 {dimension_numbers = #tpu.dot_dimension_numbers<[1], [0], [0], [1], [0, 0, 1, 1], [], []>} : vector<32x8xbf16>, vector<8x128xbf16>, vector<32x128xf32> -> vector<32x128xf32>
    %c0_25 = arith.constant 0 : index
    %c0_26 = arith.constant 0 : index
    %39 = vector.load %arg10[%c0_25, %c0_26] : memref<32x32xbf16, #tpu.memory_space<vmem>>, vector<32x32xbf16>
    %40 = arith.truncf %38 : vector<32x128xf32> to vector<32x128xbf16>
    %cst_27 = arith.constant dense<0.000000e+00> : vector<32x128xf32>
    %41 = tpu.matmul %39, %40, %cst_27 {dimension_numbers = #tpu.dot_dimension_numbers<[1], [0], [0], [1], [0, 0, 1, 1], [], []>} : vector<32x32xbf16>, vector<32x128xbf16>, vector<32x128xf32> -> vector<32x128xf32>
    %c0_28 = arith.constant 0 : index
    %c0_29 = arith.constant 0 : index
    %42 = vector.load %arg11[%c0_28, %c0_29] : memref<32x1xf32, #tpu.memory_space<vmem>>, vector<32x1xf32>
    %43 = vector.broadcast %42 : vector<32x1xf32> to vector<32x128xf32>
    %44 = arith.addf %41, %43 : vector<32x128xf32>
    %cst_30 = arith.constant 0.000000e+00 : f32
    %45 = vector.broadcast %cst_30 : f32 to vector<32x128xf32>
    %46 = arith.maximumf %44, %45 : vector<32x128xf32>
    %c0_31 = arith.constant 0 : index
    %c0_32 = arith.constant 0 : index
    %c0_33 = arith.constant 0 : index
    %47 = vector.load %arg12[%c0_31, %c0_32, %c0_33] : memref<1x32x128xf32, #tpu.memory_space<vmem>>, vector<1x32x128xf32>
    %48 = vector.shape_cast %47 : vector<1x32x128xf32> to vector<32x128xf32>
    %49 = vector.shape_cast %46 : vector<32x128xf32> to vector<1x32x128xf32>
    tpu.vector_store %arg12[%c0_31, %c0_32, %c0_33], %49 {strides = array<i32>} : memref<1x32x128xf32, #tpu.memory_space<vmem>>, vector<1x32x128xf32>,
    return
  }
  func.func @transform_0(%arg0: i32, %arg1: i32) -> (i32, i32, i32) {
    %c0_i32 = arith.constant 0 : i32
    %c0_i32_0 = arith.constant 0 : i32
    return %arg0, %c0_i32, %arg1 : i32, i32, i32
  }
  func.func @transform_1(%arg0: i32, %arg1: i32) -> (i32, i32, i32) {
    %c0_i32 = arith.constant 0 : i32
    %c0_i32_0 = arith.constant 0 : i32
    %c0_i32_1 = arith.constant 0 : i32
    return %arg0, %c0_i32, %c0_i32_0 : i32, i32, i32
  }
  func.func @transform_2(%arg0: i32, %arg1: i32) -> (i32, i32, i32) {
    %c0_i32 = arith.constant 0 : i32
    %c0_i32_0 = arith.constant 0 : i32
    %c0_i32_1 = arith.constant 0 : i32
    return %arg0, %c0_i32, %c0_i32_0 : i32, i32, i32
  }
  func.func @transform_3(%arg0: i32, %arg1: i32) -> (i32, i32) {
    %c0_i32 = arith.constant 0 : i32
    %c0_i32_0 = arith.constant 0 : i32
    %c0_i32_1 = arith.constant 0 : i32
    return %c0_i32, %c0_i32_0 : i32, i32
  }
  func.func @transform_4(%arg0: i32, %arg1: i32) -> (i32, i32) {
    %c0_i32 = arith.constant 0 : i32
    %c0_i32_0 = arith.constant 0 : i32
    %c0_i32_1 = arith.constant 0 : i32
    return %c0_i32, %c0_i32_0 : i32, i32
  }
  func.func @transform_5(%arg0: i32, %arg1: i32) -> (i32, i32) {
    %c0_i32 = arith.constant 0 : i32
    %c0_i32_0 = arith.constant 0 : i32
    %c0_i32_1 = arith.constant 0 : i32
    return %c0_i32, %c0_i32_0 : i32, i32
  }
  func.func @transform_6(%arg0: i32, %arg1: i32) -> (i32, i32) {
    %c0_i32 = arith.constant 0 : i32
    %c0_i32_0 = arith.constant 0 : i32
    %c0_i32_1 = arith.constant 0 : i32
    return %c0_i32, %c0_i32_0 : i32, i32
  }
  func.func @transform_7(%arg0: i32, %arg1: i32) -> (i32, i32) {
    %c0_i32 = arith.constant 0 : i32
    %c0_i32_0 = arith.constant 0 : i32
    %c0_i32_1 = arith.constant 0 : i32
    return %c0_i32, %c0_i32_0 : i32, i32
  }
  func.func @transform_8(%arg0: i32, %arg1: i32) -> (i32, i32) {
    %c0_i32 = arith.constant 0 : i32
    %c0_i32_0 = arith.constant 0 : i32
    %c0_i32_1 = arith.constant 0 : i32
    return %c0_i32, %c0_i32_0 : i32, i32
  }
  func.func @transform_9(%arg0: i32, %arg1: i32) -> (i32, i32) {
    %c0_i32 = arith.constant 0 : i32
    %c0_i32_0 = arith.constant 0 : i32
    %c0_i32_1 = arith.constant 0 : i32
    return %c0_i32, %c0_i32_0 : i32, i32
  }
  func.func @transform_10(%arg0: i32, %arg1: i32) -> (i32, i32, i32) {
    %c0_i32 = arith.constant 0 : i32
    %c0_i32_0 = arith.constant 0 : i32
    return %arg0, %c0_i32, %arg1 : i32, i32, i32
  }
}

</mosaic_0001>

<llo_original>
// kernel: tpu_custom_call.1
$region0: #{tpu_custom_call.1}
  #allocation0 [shape = 'u32[]', space=smem, size = 0x4, offset = 0x4, fixed_abs, tag = 'smem constant byte address 0x4 - core index']
  #allocation1 [shape = 'u32[72,128]{1,0:T(1,128)}', space=vmem, size = 0x9000, scoped, tag = 'internal scratch']
  %s0 = inlined_call_operand.vmem [shape: f32[2,32,256], index: 0, kind: input, shape index: {}]
  %s1 = inlined_call_operand.hbm [shape: bf16[2,8,32], index: 1, kind: input, shape index: {}]
  %s2 = inlined_call_operand.vmem [shape: bf16[2,32,8], index: 2, kind: input, shape index: {}]
  %s3 = inlined_call_operand.vmem [shape: f32[8,1], index: 3, kind: input, shape index: {}]
  %s4 = inlined_call_operand.vmem [shape: bf16[32,32], index: 4, kind: input, shape index: {}]
  %s5 = inlined_call_operand.vmem [shape: f32[32,1], index: 5, kind: input, shape index: {}]
  %s6 = inlined_call_operand.hbm [shape: bf16[32,32], index: 6, kind: input, shape index: {}]
  %s7 = inlined_call_operand.vmem [shape: f32[32,1], index: 7, kind: input, shape index: {}]
  %s8 = inlined_call_operand.hbm [shape: bf16[32,32], index: 8, kind: input, shape index: {}]
  %s9 = inlined_call_operand.vmem [shape: f32[32,1], index: 9, kind: input, shape index: {}]
  %s10 = inlined_call_operand.hbm [shape: f32[2,32,256], index: 10, kind: output, shape index: {}]
  %s11 = sld [smem:[#allocation0]]
  $region123: #{tpu_custom_call.1} parent=0
    _
  %s13 = ssub.s32 1, %s11
  %s14 = scalar_select 0, %s13, %s11
  $region1: #{tpu_custom_call.1} parent=0
    #allocation2 [shape = 'u8[32768]{0}', space=vmem, size = 0x8000, scoped, tag = 'input window, operand 0']
    #allocation3 [shape = 'u8[4096]{0}', space=vmem, size = 0x1000, scoped, tag = 'input window, operand 1']
    #allocation4 [shape = 's32[2]{0}', space=sflag, size = 0x8, scoped, tag = 'scoped memory for tpu_custom_call.1']
    #allocation5 [shape = 's32[2]{0}', space=sflag, size = 0x8, scoped, tag = 'scoped memory for tpu_custom_call.1']
    #allocation6 [shape = 'u8[8192]{0}', space=vmem, size = 0x2000, scoped, tag = 'input window, operand 6, single buffered']
    #allocation7 [shape = 's32[1]{0}', space=sflag, size = 0x4, scoped, tag = 'scoped memory for tpu_custom_call.1']
    #allocation8 [shape = 'u8[8192]{0}', space=vmem, size = 0x2000, scoped, tag = 'input window, operand 8, single buffered']
    #allocation9 [shape = 'u8[32768]{0}', space=vmem, size = 0x8000, scoped, tag = 'output window, operand 0']
    %15 = vsyncpa [#allocation4], 0
    %s16 = scalar_lea.sflag [#allocation4], 1
    %17 = vsyncpa %s16, 0
    %18 = vsyncpa [#allocation7], 0
    %19 = vsyncpa [#allocation5], 0
    %s20 = scalar_lea.sflag [#allocation5], 1
    %21 = vsyncpa %s20, 0
    loop: start=0, step=1, limit=6
    $region2: #{tpu_custom_call.1} parent=1 // loop_pre_header
      _
    $region3: #{tpu_custom_call.1} parent=1 // loop_header
      %s23 = sphi 0, %s27
      %p24 = scmp.ge.s32.totalorder %s23, 6
      %s30 = sphi 0, %s42
      %s31 = sphi 0, %s38
      %s32 = sphi 0, %s30
      %s33 = sphi 0, %s31
      %s34 = sphi 0, %s32
      %s35 = sphi 0, %s33
      %s47 = sphi 0, %s49
      %s50 = sphi 0, %s47
      %s51 = sphi 0, %s50
      %s67 = sphi 0, %s51
      %s73 = sphi 0, %s75
      %s76 = sphi 0, %s73
      %s77 = sphi 0, %s76
      %s93 = sphi 0, %s77
      %s99 = sphi 0, %s101
      %s102 = sphi 0, %s99
      %s103 = sphi 0, %s102
      %s119 = sphi 0, %s103
      %s123 = sphi 0, %s123
      %s125 = sphi 0, %s123
      %s126 = sphi 0, %s125
      %s140 = sphi 0, %s126
      %s144 = sphi 0, %s144
      %s146 = sphi 0, %s144
      %s147 = sphi 0, %s146
      %s161 = sphi 0, %s147
      %s165 = sphi 0, %s165
      %s167 = sphi 0, %s165
      %s168 = sphi 0, %s167
      %s182 = sphi 0, %s168
      %s186 = sphi 0, %s186
      %s188 = sphi 0, %s186
      %s189 = sphi 0, %s188
      %s203 = sphi 0, %s189
      %s207 = sphi 0, %s207
      %s209 = sphi 0, %s207
      %s210 = sphi 0, %s209
      %s224 = sphi 0, %s210
      %s228 = sphi 0, %s228
      %s230 = sphi 0, %s228
      %s231 = sphi 0, %s230
      %s245 = sphi 0, %s231
      %s249 = sphi 0, %s249
      %s251 = sphi 0, %s249
      %s252 = sphi 0, %s251
      %s266 = sphi 0, %s252
      %s274 = sphi 0, %s276
      %s277 = sphi 0, %s274
      %s278 = sphi 0, %s277
      %s294 = sphi 0, %s278
    $region4: #{tpu_custom_call.1} parent=1 // loop_header_branch
      %26 = sbr.rel (%p24) target = $region8
    $region5: #{tpu_custom_call.1} parent=1 // loop_body
      %s28 = ssub.s32 %s23, 1
      %s29 = ssub.s32 %s23, 2
      %s36 = sadd.s32 1, %s31
      %p37 = scmp.ge.s32.totalorder %s36, 2
      %s38 = scalar_select %p37, 0, %s36
      %s39 = sadd.s32 1, %s30
      %s40 = scalar_select %p37, %s39, %s30
      %p41 = scmp.ge.s32.totalorder %s40, 2
      %s42 = scalar_select %p41, 0, %s40
      %s43 = ssub.s32 %s30, %s42
      %s44 = ssub.s32 %s31, %s38
      %s45 = sor.u32 %s43, %s44
      %p46 = scmp.eq.s32.totalorder %s45, 0
      %s48 = sadd.s32 %s47, 1
      %s49 = scalar_select %p46, %s47, %s48
      %p52 = pneg %p46
      %p53 = scmp.eq.s32.totalorder %s23, 3
      %p54 = por %p52, %p53
      %p55 = scmp.ne.s32.totalorder %s47, %s50
      %p56 = scmp.eq.s32.totalorder %s23, 0
      %p57 = por %p55, %p56
      %p58 = scmp.ne.s32.totalorder %s47, %s50
      %p59 = scmp.eq.s32.totalorder %s28, 3
      %p60 = por %p58, %p59
      %p61 = scmp.ne.s32.totalorder %s50, %s51
      %p62 = scmp.eq.s32.totalorder %s28, 0
      %p63 = por %p61, %p62
      %p64 = scmp.ne.s32.totalorder %s50, %s51
      %p65 = scmp.eq.s32.totalorder %s29, 3
      %p66 = por %p64, %p65
      %p68 = scmp.ne.s32.totalorder %s51, %s67
      %p69 = scmp.eq.s32.totalorder %s29, 0
      %p70 = por %p68, %p69
      %s71 = ssub.s32 %s30, %s42
      %p72 = scmp.eq.s32.totalorder %s71, 0
      %s74 = sadd.s32 %s73, 1
      %s75 = scalar_select %p72, %s73, %s74
      %p78 = pneg %p72
      %p79 = scmp.eq.s32.totalorder %s23, 3
      %p80 = por %p78, %p79
      %p81 = scmp.ne.s32.totalorder %s73, %s76
      %p82 = scmp.eq.s32.totalorder %s23, 0
      %p83 = por %p81, %p82
      %p84 = scmp.ne.s32.totalorder %s73, %s76
      %p85 = scmp.eq.s32.totalorder %s28, 3
      %p86 = por %p84, %p85
      %p87 = scmp.ne.s32.totalorder %s76, %s77
      %p88 = scmp.eq.s32.totalorder %s28, 0
      %p89 = por %p87, %p88
      %p90 = scmp.ne.s32.totalorder %s76, %s77
      %p91 = scmp.eq.s32.totalorder %s29, 3
      %p92 = por %p90, %p91
      %p94 = scmp.ne.s32.totalorder %s77, %s93
      %p95 = scmp.eq.s32.totalorder %s29, 0
      %p96 = por %p94, %p95
      %s97 = ssub.s32 %s30, %s42
      %p98 = scmp.eq.s32.totalorder %s97, 0
      %s100 = sadd.s32 %s99, 1
      %s101 = scalar_select %p98, %s99, %s100
      %p104 = pneg %p98
      %p105 = scmp.eq.s32.totalorder %s23, 3
      %p106 = por %p104, %p105
      %p107 = scmp.ne.s32.totalorder %s99, %s102
      %p108 = scmp.eq.s32.totalorder %s23, 0
      %p109 = por %p107, %p108
      %p110 = scmp.ne.s32.totalorder %s99, %s102
      %p111 = scmp.eq.s32.totalorder %s28, 3
      %p112 = por %p110, %p111
      %p113 = scmp.ne.s32.totalorder %s102, %s103
      %p114 = scmp.eq.s32.totalorder %s28, 0
      %p115 = por %p113, %p114
      %p116 = scmp.ne.s32.totalorder %s102, %s103
      %p117 = scmp.eq.s32.totalorder %s29, 3
      %p118 = por %p116, %p117
      %p120 = scmp.ne.s32.totalorder %s103, %s119
      %p121 = scmp.eq.s32.totalorder %s29, 0
      %p122 = por %p120, %p121
      %s124 = sadd.s32 %s123, 1
      %p127 = scmp.eq.s32.totalorder %s23, 3
      %p128 = scmp.ne.s32.totalorder %s123, %s125
      %p129 = scmp.eq.s32.totalorder %s23, 0
      %p130 = por %p128, %p129
      %p131 = scmp.ne.s32.totalorder %s123, %s125
      %p132 = scmp.eq.s32.totalorder %s28, 3
      %p133 = por %p131, %p132
      %p134 = scmp.ne.s32.totalorder %s125, %s126
      %p135 = scmp.eq.s32.totalorder %s28, 0
      %p136 = por %p134, %p135
      %p137 = scmp.ne.s32.totalorder %s125, %s126
      %p138 = scmp.eq.s32.totalorder %s29, 3
      %p139 = por %p137, %p138
      %p141 = scmp.ne.s32.totalorder %s126, %s140
      %p142 = scmp.eq.s32.totalorder %s29, 0
      %p143 = por %p141, %p142
      %s145 = sadd.s32 %s144, 1
      %p148 = scmp.eq.s32.totalorder %s23, 3
      %p149 = scmp.ne.s32.totalorder %s144, %s146
      %p150 = scmp.eq.s32.totalorder %s23, 0
      %p151 = por %p149, %p150
      %p152 = scmp.ne.s32.totalorder %s144, %s146
      %p153 = scmp.eq.s32.totalorder %s28, 3
      %p154 = por %p152, %p153
      %p155 = scmp.ne.s32.totalorder %s146, %s147
      %p156 = scmp.eq.s32.totalorder %s28, 0
      %p157 = por %p155, %p156
      %p158 = scmp.ne.s32.totalorder %s146, %s147
      %p159 = scmp.eq.s32.totalorder %s29, 3
      %p160 = por %p158, %p159
      %p162 = scmp.ne.s32.totalorder %s147, %s161
      %p163 = scmp.eq.s32.totalorder %s29, 0
      %p164 = por %p162, %p163
      %s166 = sadd.s32 %s165, 1
      %p169 = scmp.eq.s32.totalorder %s23, 3
      %p170 = scmp.ne.s32.totalorder %s165, %s167
      %p171 = scmp.eq.s32.totalorder %s23, 0
      %p172 = por %p170, %p171
      %p173 = scmp.ne.s32.totalorder %s165, %s167
      %p174 = scmp.eq.s32.totalorder %s28, 3
      %p175 = por %p173, %p174
      %p176 = scmp.ne.s32.totalorder %s167, %s168
      %p177 = scmp.eq.s32.totalorder %s28, 0
      %p178 = por %p176, %p177
      %p179 = scmp.ne.s32.totalorder %s167, %s168
      %p180 = scmp.eq.s32.totalorder %s29, 3
      %p181 = por %p179, %p180
      %p183 = scmp.ne.s32.totalorder %s168, %s182
      %p184 = scmp.eq.s32.totalorder %s29, 0
      %p185 = por %p183, %p184
      %s187 = sadd.s32 %s186, 1
      %p190 = scmp.eq.s32.totalorder %s23, 3
      %p191 = scmp.ne.s32.totalorder %s186, %s188
      %p192 = scmp.eq.s32.totalorder %s23, 0
      %p193 = por %p191, %p192
      %p194 = scmp.ne.s32.totalorder %s186, %s188
      %p195 = scmp.eq.s32.totalorder %s28, 3
      %p196 = por %p194, %p195
      %p197 = scmp.ne.s32.totalorder %s188, %s189
      %p198 = scmp.eq.s32.totalorder %s28, 0
      %p199 = por %p197, %p198
      %p200 = scmp.ne.s32.totalorder %s188, %s189
      %p201 = scmp.eq.s32.totalorder %s29, 3
      %p202 = por %p200, %p201
      %p204 = scmp.ne.s32.totalorder %s189, %s203
      %p205 = scmp.eq.s32.totalorder %s29, 0
      %p206 = por %p204, %p205
      %s208 = sadd.s32 %s207, 1
      %p211 = scmp.eq.s32.totalorder %s23, 3
      %p212 = scmp.ne.s32.totalorder %s207, %s209
      %p213 = scmp.eq.s32.totalorder %s23, 0
      %p214 = por %p212, %p213
      %p215 = scmp.ne.s32.totalorder %s207, %s209
      %p216 = scmp.eq.s32.totalorder %s28, 3
      %p217 = por %p215, %p216
      %p218 = scmp.ne.s32.totalorder %s209, %s210
      %p219 = scmp.eq.s32.totalorder %s28, 0
      %p220 = por %p218, %p219
      %p221 = scmp.ne.s32.totalorder %s209, %s210
      %p222 = scmp.eq.s32.totalorder %s29, 3
      %p223 = por %p221, %p222
      %p225 = scmp.ne.s32.totalorder %s210, %s224
      %p226 = scmp.eq.s32.totalorder %s29, 0
      %p227 = por %p225, %p226
      %s229 = sadd.s32 %s228, 1
      %p232 = scmp.eq.s32.totalorder %s23, 3
      %p233 = scmp.ne.s32.totalorder %s228, %s230
      %p234 = scmp.eq.s32.totalorder %s23, 0
      %p235 = por %p233, %p234
      %p236 = scmp.ne.s32.totalorder %s228, %s230
      %p237 = scmp.eq.s32.totalorder %s28, 3
      %p238 = por %p236, %p237
      %p239 = scmp.ne.s32.totalorder %s230, %s231
      %p240 = scmp.eq.s32.totalorder %s28, 0
      %p241 = por %p239, %p240
      %p242 = scmp.ne.s32.totalorder %s230, %s231
      %p243 = scmp.eq.s32.totalorder %s29, 3
      %p244 = por %p242, %p243
      %p246 = scmp.ne.s32.totalorder %s231, %s245
      %p247 = scmp.eq.s32.totalorder %s29, 0
      %p248 = por %p246, %p247
      %s250 = sadd.s32 %s249, 1
      %p253 = scmp.eq.s32.totalorder %s23, 3
      %p254 = scmp.ne.s32.totalorder %s249, %s251
      %p255 = scmp.eq.s32.totalorder %s23, 0
      %p256 = por %p254, %p255
      %p257 = scmp.ne.s32.totalorder %s249, %s251
      %p258 = scmp.eq.s32.totalorder %s28, 3
      %p259 = por %p257, %p258
      %p260 = scmp.ne.s32.totalorder %s251, %s252
      %p261 = scmp.eq.s32.totalorder %s28, 0
      %p262 = por %p260, %p261
      %p263 = scmp.ne.s32.totalorder %s251, %s252
      %p264 = scmp.eq.s32.totalorder %s29, 3
      %p265 = por %p263, %p264
      %p267 = scmp.ne.s32.totalorder %s252, %s266
      %p268 = scmp.eq.s32.totalorder %s29, 0
      %p269 = por %p267, %p268
      %s270 = ssub.s32 %s30, %s42
      %s271 = ssub.s32 %s31, %s38
      %s272 = sor.u32 %s270, %s271
      %p273 = scmp.eq.s32.totalorder %s272, 0
      %s275 = sadd.s32 %s274, 1
      %s276 = scalar_select %p273, %s274, %s275
      %p279 = pneg %p273
      %p280 = scmp.eq.s32.totalorder %s23, 3
      %p281 = por %p279, %p280
      %p282 = scmp.ne.s32.totalorder %s274, %s277
      %p283 = scmp.eq.s32.totalorder %s23, 0
      %p284 = por %p282, %p283
      %p285 = scmp.ne.s32.totalorder %s274, %s277
      %p286 = scmp.eq.s32.totalorder %s28, 3
      %p287 = por %p285, %p286
      %p288 = scmp.ne.s32.totalorder %s277, %s278
      %p289 = scmp.eq.s32.totalorder %s28, 0
      %p290 = por %p288, %p289
      %p291 = scmp.ne.s32.totalorder %s277, %s278
      %p292 = scmp.eq.s32.totalorder %s29, 3
      %p293 = por %p291, %p292
      %p295 = scmp.ne.s32.totalorder %s278, %s294
      %p296 = scmp.eq.s32.totalorder %s29, 0
      %p297 = por %p295, %p296
      %p298 = scmp.le.s32.totalorder 1, %s23
      %p299 = scmp.lt.s32.totalorder %s23, 5
      %p300 = pnand %p298, %p299
      %p301 = pneg %p300
      // Predicated region
      $region9: #{tpu_custom_call.1} parent=5 // pred_check
        _
      $region10: #{tpu_custom_call.1} parent=5 // pred_check_branch
        %303 = sbr.rel (%p300) target = $region12
      $region11: #{tpu_custom_call.1} parent=5 // pred_region
        %s304 = ssub.s32 %s23, 1
        // Predicated region
        $region13: #{tpu_custom_call.1} parent=11 // pred_check
          %p305 = pneg %p136
        $region14: #{tpu_custom_call.1} parent=11 // pred_check_branch
          %307 = sbr.rel (%p305) target = $region16
        $region15: #{tpu_custom_call.1} parent=11 // pred_region
          _
        $region16: #{tpu_custom_call.1} parent=11 // pred_fallthru
          _
        // Predicated region
        $region17: #{tpu_custom_call.1} parent=11 // pred_check
          %p308 = pneg %p157
        $region18: #{tpu_custom_call.1} parent=11 // pred_check_branch
          %310 = sbr.rel (%p308) target = $region20
        $region19: #{tpu_custom_call.1} parent=11 // pred_region
          _
        $region20: #{tpu_custom_call.1} parent=11 // pred_fallthru
          _
        // Predicated region
        $region21: #{tpu_custom_call.1} parent=11 // pred_check
          %p311 = pneg %p178
        $region22: #{tpu_custom_call.1} parent=11 // pred_check_branch
          %313 = sbr.rel (%p311) target = $region24
        $region23: #{tpu_custom_call.1} parent=11 // pred_region
          _
        $region24: #{tpu_custom_call.1} parent=11 // pred_fallthru
          _
        // Predicated region
        $region25: #{tpu_custom_call.1} parent=11 // pred_check
          %p314 = pneg %p199
        $region26: #{tpu_custom_call.1} parent=11 // pred_check_branch
          %316 = sbr.rel (%p314) target = $region28
        $region27: #{tpu_custom_call.1} parent=11 // pred_region
          %318 = vsyncadd [#allocation7], 0
          %s319 = sshll.u32 %s6, 4
          %s320 = int_to_ptr.hbm [resolvable:$true] %s319
          %s321 = sshll.u32 [#allocation6], 4
          %s322 = int_to_ptr.vmem [resolvable:$true] %s321
          %327 = dma.hbm_to_vmem [thread:$0]  %s320, 256, %s322, [#allocation7], 64, 64, 4
        $region28: #{tpu_custom_call.1} parent=11 // pred_fallthru
          _
        // Predicated region
        $region29: #{tpu_custom_call.1} parent=11 // pred_check
          %p328 = pneg %p220
        $region30: #{tpu_custom_call.1} parent=11 // pred_check_branch
          %330 = sbr.rel (%p328) target = $region32
        $region31: #{tpu_custom_call.1} parent=11 // pred_region
          _
        $region32: #{tpu_custom_call.1} parent=11 // pred_fallthru
          _
        // Predicated region
        $region33: #{tpu_custom_call.1} parent=11 // pred_check
          %p331 = pneg %p241
        $region34: #{tpu_custom_call.1} parent=11 // pred_check_branch
          %333 = sbr.rel (%p331) target = $region36
        $region35: #{tpu_custom_call.1} parent=11 // pred_region
          %335 = vsyncadd [#allocation7], 0
          %s336 = sshll.u32 %s8, 4
          %s337 = int_to_ptr.hbm [resolvable:$true] %s336
          %s338 = sshll.u32 [#allocation8], 4
          %s339 = int_to_ptr.vmem [resolvable:$true] %s338
          %344 = dma.hbm_to_vmem [thread:$0]  %s337, 256, %s339, [#allocation7], 64, 64, 4
        $region36: #{tpu_custom_call.1} parent=11 // pred_fallthru
          _
        // Predicated region
        $region37: #{tpu_custom_call.1} parent=11 // pred_check
          %p345 = pneg %p262
        $region38: #{tpu_custom_call.1} parent=11 // pred_check_branch
          %347 = sbr.rel (%p345) target = $region40
        $region39: #{tpu_custom_call.1} parent=11 // pred_region
          _
        $region40: #{tpu_custom_call.1} parent=11 // pred_fallthru
          _
      $region12: #{tpu_custom_call.1} parent=5 // pred_fallthru
        _
      %p348 = scmp.lt.s32.totalorder %s23, 4
      // Predicated region
      $region41: #{tpu_custom_call.1} parent=5 // pred_check
        %p349 = pneg %p348
      $region42: #{tpu_custom_call.1} parent=5 // pred_check_branch
        %351 = sbr.rel (%p349) target = $region44
      $region43: #{tpu_custom_call.1} parent=5 // pred_region
        // Predicated region
        $region45: #{tpu_custom_call.1} parent=43 // pred_check
          %p352 = pneg %p57
        $region46: #{tpu_custom_call.1} parent=43 // pred_check_branch
          %354 = sbr.rel (%p352) target = $region48
        $region47: #{tpu_custom_call.1} parent=43 // pred_region
          %s355 = sand.u32 %s47, 1
          %s356 = sand.u32 %s47, 1
          %s357 = smul.addr %s356, 32
          %s358 = scalar_lea.vmem [#allocation2], %s357
          %s359 = smul.addr %s30, 8
          %s360 = sadd.s32 %s31, %s359
          %s361 = smul.addr %s360, 8
          %s362 = scalar_lea.vmem %s0, %s361
          // Predicated region
          $region49: #{tpu_custom_call.1} parent=47 // pred_check
            _
          $region50: #{tpu_custom_call.1} parent=47 // pred_check_branch
            %364 = sbr.rel (0) target = $region52
          $region51: #{tpu_custom_call.1} parent=47 // pred_region
            // Predicated region
            $region53: #{tpu_custom_call.1} parent=51 // pred_check
              _
            $region54: #{tpu_custom_call.1} parent=51 // pred_check_branch
              %366 = sbr.rel (0) target = $region56
            $region55: #{tpu_custom_call.1} parent=51 // pred_region
              // Predicated region
              $region68: #{tpu_custom_call.1} parent=55 // pred_check
                _
              $region69: #{tpu_custom_call.1} parent=55 // pred_check_branch
                %388 = sbr.rel (0) target = $region71
              $region70: #{tpu_custom_call.1} parent=55 // pred_region
                loop: start=0, step=1, limit=1
                $region72: #{tpu_custom_call.1} parent=70 // loop_pre_header
                  _
                $region73: #{tpu_custom_call.1} parent=70 // loop_header
                  %s390 = sphi 0, %s394
                  %p391 = scmp.ge.s32.totalorder %s390, 1
                  %s395 = sphi %s362, %s362
                  %s396 = sphi %s358, %s358
                $region74: #{tpu_custom_call.1} parent=70 // loop_header_branch
                  %393 = sbr.rel (%p391) target = $region78
                $region75: #{tpu_custom_call.1} parent=70 // loop_body
                  %v397 = vld [vmem:[%s395] sm:$0xff]
                  %398 = vst [vmem:[%s396] sm:$0xff] %v397
                  %v399 = vld [vmem:[%s395 + $0x10] sm:$0xff]
                  %400 = vst [vmem:[%s396 + $0x8] sm:$0xff] %v399
                  %v401 = vld [vmem:[%s395 + $0x20] sm:$0xff]
                  %402 = vst [vmem:[%s396 + $0x10] sm:$0xff] %v401
                  %v403 = vld [vmem:[%s395 + $0x30] sm:$0xff]
                  %404 = vst [vmem:[%s396 + $0x18] sm:$0xff] %v403
                $region76: #{tpu_custom_call.1} parent=70 // loop_footer
                  %s394 = sadd.s32 1, %s390
                $region77: #{tpu_custom_call.1} parent=70 // loop_footer_branch
                  %389 = sbr.rel target = $region73
                $region78: #{tpu_custom_call.1} parent=70 // loop_exit
                  _
              $region71: #{tpu_custom_call.1} parent=55 // pred_fallthru
                _
              // Predicated region
              $region79: #{tpu_custom_call.1} parent=55 // pred_check
                _
              $region80: #{tpu_custom_call.1} parent=55 // pred_check_branch
                %406 = sbr.rel target = $region82
              $region81: #{tpu_custom_call.1} parent=55 // pred_region
                _
              $region82: #{tpu_custom_call.1} parent=55 // pred_fallthru
                _
            $region56: #{tpu_custom_call.1} parent=51 // pred_fallthru
              _
            // Predicated region
            $region57: #{tpu_custom_call.1} parent=51 // pred_check
              _
            $region58: #{tpu_custom_call.1} parent=51 // pred_check_branch
              %368 = sbr.rel target = $region60
            $region59: #{tpu_custom_call.1} parent=51 // pred_region
              %s370 = ssub.s32 256, 1
              loop: start=0, step=1, limit=1
              $region61: #{tpu_custom_call.1} parent=59 // loop_pre_header
                _
              $region62: #{tpu_custom_call.1} parent=59 // loop_header
                %s372 = sphi 0, %s376
                %p373 = scmp.ge.s32.totalorder %s372, 1
                %s377 = sphi %s362, %s362
                %s378 = sphi %s358, %s358
              $region63: #{tpu_custom_call.1} parent=59 // loop_header_branch
                %375 = sbr.rel (%p373) target = $region67
              $region64: #{tpu_custom_call.1} parent=59 // loop_body
                %v379 = vld [vmem:[%s377] sm:%s370]
                %380 = vst [vmem:[%s378] sm:%s370] %v379
                %v381 = vld [vmem:[%s377 + $0x10] sm:%s370]
                %382 = vst [vmem:[%s378 + $0x8] sm:%s370] %v381
                %v383 = vld [vmem:[%s377 + $0x20] sm:%s370]
                %384 = vst [vmem:[%s378 + $0x10] sm:%s370] %v383
                %v385 = vld [vmem:[%s377 + $0x30] sm:%s370]
                %386 = vst [vmem:[%s378 + $0x18] sm:%s370] %v385
              $region65: #{tpu_custom_call.1} parent=59 // loop_footer
                %s376 = sadd.s32 1, %s372
              $region66: #{tpu_custom_call.1} parent=59 // loop_footer_branch
                %371 = sbr.rel target = $region62
              $region67: #{tpu_custom_call.1} parent=59 // loop_exit
                _
            $region60: #{tpu_custom_call.1} parent=51 // pred_fallthru
              _
          $region52: #{tpu_custom_call.1} parent=47 // pred_fallthru
            _
          %407 = vnop
        $region48: #{tpu_custom_call.1} parent=43 // pred_fallthru
          _
        // Predicated region
        $region83: #{tpu_custom_call.1} parent=43 // pred_check
          %p408 = pneg %p83
        $region84: #{tpu_custom_call.1} parent=43 // pred_check_branch
          %410 = sbr.rel (%p408) target = $region86
        $region85: #{tpu_custom_call.1} parent=43 // pred_region
          %s411 = sand.u32 %s73, 1
          %s412 = scalar_lea.sflag [#allocation4], %s411
          %s413 = sand.u32 %s73, 1
          %s414 = smul.addr %s413, 4
          %s415 = scalar_lea.vmem [#allocation3], %s414
          %417 = vsyncadd %s412, 0
          %s418 = smul.addr %s30, 4
          %s419 = scalar_lea.hbm %s1, %s418
          %s421 = sshll.u32 %s419, 4
          %s422 = int_to_ptr.hbm [resolvable:$true] %s421
          %s423 = sshll.u32 %s415, 4
          %s424 = int_to_ptr.vmem [resolvable:$true] %s423
          %426 = dma.hbm_to_vmem [thread:$0]  %s422, 64, %s424, %s412
        $region86: #{tpu_custom_call.1} parent=43 // pred_fallthru
          _
        // Predicated region
        $region87: #{tpu_custom_call.1} parent=43 // pred_check
          %p427 = pneg %p109
        $region88: #{tpu_custom_call.1} parent=43 // pred_check_branch
          %429 = sbr.rel (%p427) target = $region90
        $region89: #{tpu_custom_call.1} parent=43 // pred_region
          %p430 = scmp.lt.s32.totalorder %s30, 1
          %s431 = scalar_select %p430, %s30, 1
          %s432 = smul.addr %s431, 4
          %s433 = smul.addr %s432, 4
          %s434 = scalar_lea.vmem %s2, %s433
        $region90: #{tpu_custom_call.1} parent=43 // pred_fallthru
          _
      $region44: #{tpu_custom_call.1} parent=5 // pred_fallthru
        _
      %p435 = scmp.le.s32.totalorder 1, %s23
      %p436 = scmp.lt.s32.totalorder %s23, 5
      %p437 = pnand %p435, %p436
      %p438 = pneg %p437
      // Predicated region
      $region91: #{tpu_custom_call.1} parent=5 // pred_check
        _
      $region92: #{tpu_custom_call.1} parent=5 // pred_check_branch
        %440 = sbr.rel (%p437) target = $region94
      $region93: #{tpu_custom_call.1} parent=5 // pred_region
        %s441 = ssub.s32 %s23, 1
        %s442 = sand.u32 %s50, 1
        %s443 = sand.u32 %s50, 1
        %s444 = smul.addr %s443, 32
        %s445 = scalar_lea.vmem [#allocation2], %s444
        // Predicated region
        $region95: #{tpu_custom_call.1} parent=93 // pred_check
          %p446 = pneg %p63
        $region96: #{tpu_custom_call.1} parent=93 // pred_check_branch
          %448 = sbr.rel (%p446) target = $region98
        $region97: #{tpu_custom_call.1} parent=93 // pred_region
          _
        $region98: #{tpu_custom_call.1} parent=93 // pred_fallthru
          _
        %s449 = sand.u32 %s76, 1
        %s450 = scalar_lea.sflag [#allocation4], %s449
        %s451 = sand.u32 %s76, 1
        %s452 = smul.addr %s451, 4
        %s453 = scalar_lea.vmem [#allocation3], %s452
        // Predicated region
        $region99: #{tpu_custom_call.1} parent=93 // pred_check
          %p454 = pneg %p89
        $region100: #{tpu_custom_call.1} parent=93 // pred_check_branch
          %456 = sbr.rel (%p454) target = $region102
        $region101: #{tpu_custom_call.1} parent=93 // pred_region
          %458 = dma.done %s450, 64
        $region102: #{tpu_custom_call.1} parent=93 // pred_fallthru
          _
        // Predicated region
        $region103: #{tpu_custom_call.1} parent=93 // pred_check
          %p459 = pneg %p199
        $region104: #{tpu_custom_call.1} parent=93 // pred_check_branch
          %461 = sbr.rel (%p459) target = $region106
        $region105: #{tpu_custom_call.1} parent=93 // pred_region
          %463 = dma.done [#allocation7], 256
        $region106: #{tpu_custom_call.1} parent=93 // pred_fallthru
          _
        // Predicated region
        $region107: #{tpu_custom_call.1} parent=93 // pred_check
          %p464 = pneg %p241
        $region108: #{tpu_custom_call.1} parent=93 // pred_check_branch
          %466 = sbr.rel (%p464) target = $region110
        $region109: #{tpu_custom_call.1} parent=93 // pred_region
          %468 = dma.done [#allocation7], 256
        $region110: #{tpu_custom_call.1} parent=93 // pred_fallthru
          _
        %s469 = sand.u32 %s50, 1
        %s470 = sand.u32 %s50, 1
        %s471 = smul.addr %s470, 32
        %s472 = scalar_lea.vmem [#allocation2], %s471
        %p473 = pneg %p63
        %p474 = pneg %p60
        %s475 = sand.u32 %s76, 1
        %s476 = scalar_lea.sflag [#allocation4], %s475
        %s477 = sand.u32 %s76, 1
        %s478 = smul.addr %s477, 4
        %s479 = scalar_lea.vmem [#allocation3], %s478
        %p480 = pneg %p89
        %p481 = pneg %p86
        %p482 = scmp.lt.s32.totalorder %s32, 1
        %s483 = scalar_select %p482, %s32, 1
        %s484 = smul.addr %s483, 4
        %s485 = smul.addr %s484, 4
        %s486 = scalar_lea.vmem %s2, %s485
        %p487 = pneg %p115
        %p488 = pneg %p112
        %p489 = pneg %p136
        %p490 = pneg %p133
        %p491 = pneg %p157
        %p492 = pneg %p154
        %p493 = pneg %p178
        %p494 = pneg %p175
        %p495 = pneg %p199
        %p496 = pneg %p196
        %p497 = pneg %p220
        %p498 = pneg %p217
        %p499 = pneg %p241
        %p500 = pneg %p238
        %p501 = pneg %p262
        %p502 = pneg %p259
        %p503 = pneg %p290
        %p504 = pneg %p287
        %s505 = sand.u32 %s277, 1
        %s506 = scalar_lea.sflag [#allocation5], %s505
        %s507 = sand.u32 %s277, 1
        %s508 = smul.addr %s507, 32
        %s509 = scalar_lea.vmem [#allocation9], %s508
        %p510 = scmp.lt.s32.totalorder %s32, 1
        %s511 = scalar_select %p510, %s32, 1
        %s512 = smul.addr %s511, 4
        %s513 = smul.addr %s512, 4
        %s514 = scalar_lea.vmem %s2, %s513
        %v516 = vld [vmem:[%s445] sm:$0xff]
        %v517 = vld [vmem:[%s445 + $0x8] sm:$0xff]
        %v518 = vld [vmem:[%s445 + $0x10] sm:$0xff]
        %v519 = vld [vmem:[%s445 + $0x18] sm:$0xff]
        %v520 = vpack.c.bf16 %v517, %v516
        %v521 = vpack.c.bf16 %v519, %v518
        %v522 = vld [vmem:[%s4] sm:$0xf]
        %v523 = vld [vmem:[%s4 + $0x4] sm:$0xf]
        %v524 = vld [vmem:[%s4 + $0x8] sm:$0xf]
        %v525 = vld [vmem:[%s4 + $0xc] sm:$0xf]
        %v526 = vld [vmem:[%s5] sm:$0xff]
        %v527 = vld [vmem:[%s5 + $0x8] sm:$0xff]
        %v528 = vld [vmem:[%s5 + $0x10] sm:$0xff]
        %v529 = vld [vmem:[%s5 + $0x18] sm:$0xff]
        %531 = vset.pattern.permute.xlu0 0
        %532 = vperm.xlu0 %531, %v526
        %v533 = vpop.permute.xlu0 %532
        %536 = vset.pattern.permute.xlu0 0
        %537 = vperm.xlu0 %536, %v527
        %v538 = vpop.permute.xlu0 %537
        %541 = vset.pattern.permute.xlu0 0
        %542 = vperm.xlu0 %541, %v528
        %v543 = vpop.permute.xlu0 %542
        %546 = vset.pattern.permute.xlu0 0
        %547 = vperm.xlu0 %546, %v529
        %v548 = vpop.permute.xlu0 %547
        %v554 = vunpack.c.l.b16 %v522
        %v555 = vunpack.c.l.b16 %v523
        %v556 = vunpack.c.l.b16 %v524
        %v557 = vunpack.c.l.b16 %v525
        %v558 = vpack.c.b16 %v555, %v554
        %v559 = vpack.c.b16 %v557, %v556
        %vm560 = vcmask 261120
        %v562 = vsel %vm560, %v558, 0
        %v565 = vsel %vm560, %v559, 0
        %567 = vmatpush.bf16.msra.mxu0 0
        %568 = vmatpush.bf16.msra.mxu0 0
        %569 = vmatpush.bf16.msra.mxu0 0
        %570 = vmatpush.bf16.msra.mxu0 0
        %571 = vmatpush.bf16.msra.mxu0 0
        %572 = vmatpush.bf16.msra.mxu0 0
        %573 = vmatpush.bf16.msra.mxu0 %v521
        %574 = vmatpush.bf16.msra.mxu0 %v520
        %575 = vmatmul.bf16.gmra.mxu0 %v562
        %v576 = vpop.f32.mrf.mxu0
        %v577 = vadd.f32 %v533, %v576
        %v578 = vpop.f32.mrf.mxu0
        %v579 = vadd.f32 %v538, %v578
        %580 = vmatmul.bf16.gmra.mxu0 %v565
        %v581 = vpop.f32.mrf.mxu0
        %v582 = vadd.f32 %v543, %v581
        %v583 = vpop.f32.mrf.mxu0
        %v584 = vadd.f32 %v548, %v583
        %585 = vdwg.mxu0
        %v586 = vmax.f32 %v577, 0.0
        %v587 = vmax.f32 %v579, 0.0
        %v588 = vmax.f32 %v582, 0.0
        %v589 = vmax.f32 %v584, 0.0
        %v590 = vld [vmem:[#allocation6] sm:$0xf]
        %v591 = vld [vmem:[#allocation6 + $0x4] sm:$0xf]
        %v592 = vld [vmem:[#allocation6 + $0x8] sm:$0xf]
        %v593 = vld [vmem:[#allocation6 + $0xc] sm:$0xf]
        %v594 = vpack.c.bf16 %v587, %v586
        %v595 = vpack.c.bf16 %v589, %v588
        %v596 = vld [vmem:[%s7] sm:$0xff]
        %v597 = vld [vmem:[%s7 + $0x8] sm:$0xff]
        %v598 = vld [vmem:[%s7 + $0x10] sm:$0xff]
        %v599 = vld [vmem:[%s7 + $0x18] sm:$0xff]
        %601 = vset.pattern.permute.xlu0 0
        %602 = vperm.xlu0 %601, %v596
        %v603 = vpop.permute.xlu0 %602
        %606 = vset.pattern.permute.xlu0 0
        %607 = vperm.xlu0 %606, %v597
        %v608 = vpop.permute.xlu0 %607
        %611 = vset.pattern.permute.xlu0 0
        %612 = vperm.xlu0 %611, %v598
        %v613 = vpop.permute.xlu0 %612
        %616 = vset.pattern.permute.xlu0 0
        %617 = vperm.xlu0 %616, %v599
        %v618 = vpop.permute.xlu0 %617
        %v624 = vunpack.c.l.b16 %v590
        %v625 = vunpack.c.l.b16 %v591
        %v626 = vunpack.c.l.b16 %v592
        %v627 = vunpack.c.l.b16 %v593
        %v628 = vpack.c.b16 %v625, %v624
        %v629 = vpack.c.b16 %v627, %v626
        %v631 = vsel %vm560, %v628, 0
        %v634 = vsel %vm560, %v629, 0
        %636 = vmatpush.bf16.msra.mxu0 0
        %637 = vmatpush.bf16.msra.mxu0 0
        %638 = vmatpush.bf16.msra.mxu0 0
        %639 = vmatpush.bf16.msra.mxu0 0
        %640 = vmatpush.bf16.msra.mxu0 0
        %641 = vmatpush.bf16.msra.mxu0 0
        %642 = vmatpush.bf16.msra.mxu0 %v595
        %643 = vmatpush.bf16.msra.mxu0 %v594
        %644 = vmatmul.bf16.gmra.mxu0 %v631
        %v645 = vpop.f32.mrf.mxu0
        %v646 = vadd.f32 %v603, %v645
        %v647 = vpop.f32.mrf.mxu0
        %v648 = vadd.f32 %v608, %v647
        %649 = vmatmul.bf16.gmra.mxu0 %v634
        %v650 = vpop.f32.mrf.mxu0
        %v651 = vadd.f32 %v613, %v650
        %v652 = vpop.f32.mrf.mxu0
        %v653 = vadd.f32 %v618, %v652
        %654 = vdwg.mxu0
        %v655 = vmax.f32 %v646, 0.0
        %v656 = vmax.f32 %v648, 0.0
        %v657 = vmax.f32 %v651, 0.0
        %v658 = vmax.f32 %v653, 0.0
        %v659 = vld [vmem:[%s453] sm:$0xf]
        %v660 = vpack.c.bf16 %v656, %v655
        %v661 = vpack.c.bf16 %v658, %v657
        %v662 = vld [vmem:[%s3] sm:$0xff]
        %664 = vset.pattern.permute.xlu0 0
        %665 = vperm.xlu0 %664, %v662
        %v666 = vpop.permute.xlu0 %665
        %v669 = vsel %vm560, %v659, 0
        %671 = vmatpush.bf16.msra.mxu0 0
        %672 = vmatpush.bf16.msra.mxu0 0
        %673 = vmatpush.bf16.msra.mxu0 0
        %674 = vmatpush.bf16.msra.mxu0 0
        %675 = vmatpush.bf16.msra.mxu0 0
        %676 = vmatpush.bf16.msra.mxu0 0
        %677 = vmatpush.bf16.msra.mxu0 %v661
        %678 = vmatpush.bf16.msra.mxu0 %v660
        %679 = vmatmul.bf16.gmra.mxu0 %v669
        %v680 = vpop.f32.mrf.mxu0
        %v681 = vadd.f32 %v666, %v680
        %v682 = vpop.f32.mrf.mxu0
        %683 = vdwg.mxu0
        %v684 = vrot.slane %v681, 4
        %v685 = vmax.f32 %v681, %v684
        %v686 = vrot.slane %v685, 2
        %v687 = vmax.f32 %v685, %v686
        %v688 = vrot.slane %v687, 1
        %v689 = vmax.f32 %v687, %v688
        %v690 = vsub.f32 %v681, %v689
        %v691 = vmul.f32 %v690, 1.442695
        %v692 = vpow.pop %v691
        %v693 = vrot.slane %v692, 4
        %v694 = vadd.f32 %v692, %v693
        %v695 = vrot.slane %v694, 2
        %v696 = vadd.f32 %v694, %v695
        %v697 = vrot.slane %v696, 1
        %v698 = vadd.f32 %v696, %v697
        %v699 = vrcp.pop %v698
        %v700 = vmul.f32 %v692, %v699
        %v701 = vld [vmem:[%s514] sm:$0xf]
        %v702 = vld [vmem:[%s514 + $0x4] sm:$0xf]
        %v703 = vld [vmem:[%s514 + $0x8] sm:$0xf]
        %v704 = vld [vmem:[%s514 + $0xc] sm:$0xf]
        %v705 = vpack.c.bf16 %v700, %v700
        %v710 = vunpack.c.l.b16 %v701
        %v711 = vunpack.c.l.b16 %v702
        %v712 = vunpack.c.l.b16 %v703
        %v713 = vunpack.c.l.b16 %v704
        %v714 = vpack.c.b16 %v711, %v710
        %v715 = vpack.c.b16 %v713, %v712
        %vm716 = vcmask 64512
        %v718 = vsel %vm716, %v714, 0
        %v721 = vsel %vm716, %v715, 0
        %vm723 = vcmask 1043456
        %v725 = vsel %vm723, %v705, 0
        %727 = vmatpush.bf16.msra.mxu0 0
        %728 = vmatpush.bf16.msra.mxu0 0
        %729 = vmatpush.bf16.msra.mxu0 0
        %730 = vmatpush.bf16.msra.mxu0 0
        %731 = vmatpush.bf16.msra.mxu0 0
        %732 = vmatpush.bf16.msra.mxu0 0
        %733 = vmatpush.bf16.msra.mxu0 0
        %734 = vmatpush.bf16.msra.mxu0 %v725
        %735 = vmatmul.bf16.gmra.mxu0 %v718
        %v736 = vpop.f32.mrf.mxu0
        %v737 = vadd.f32 0.0, %v736
        %v738 = vpop.f32.mrf.mxu0
        %v739 = vadd.f32 0.0, %v738
        %740 = vmatmul.bf16.gmra.mxu0 %v721
        %v741 = vpop.f32.mrf.mxu0
        %v742 = vadd.f32 0.0, %v741
        %v743 = vpop.f32.mrf.mxu0
        %v744 = vadd.f32 0.0, %v743
        %745 = vdwg.mxu0
        %v746 = vld [vmem:[#allocation8] sm:$0xf]
        %v747 = vld [vmem:[#allocation8 + $0x4] sm:$0xf]
        %v748 = vld [vmem:[#allocation8 + $0x8] sm:$0xf]
        %v749 = vld [vmem:[#allocation8 + $0xc] sm:$0xf]
        %v750 = vpack.c.bf16 %v739, %v737
        %v751 = vpack.c.bf16 %v744, %v742
        %v752 = vld [vmem:[%s9] sm:$0xff]
        %v753 = vld [vmem:[%s9 + $0x8] sm:$0xff]
        %v754 = vld [vmem:[%s9 + $0x10] sm:$0xff]
        %v755 = vld [vmem:[%s9 + $0x18] sm:$0xff]
        %757 = vset.pattern.permute.xlu0 0
        %758 = vperm.xlu0 %757, %v752
        %v759 = vpop.permute.xlu0 %758
        %762 = vset.pattern.permute.xlu0 0
        %763 = vperm.xlu0 %762, %v753
        %v764 = vpop.permute.xlu0 %763
        %767 = vset.pattern.permute.xlu0 0
        %768 = vperm.xlu0 %767, %v754
        %v769 = vpop.permute.xlu0 %768
        %772 = vset.pattern.permute.xlu0 0
        %773 = vperm.xlu0 %772, %v755
        %v774 = vpop.permute.xlu0 %773
        %v780 = vunpack.c.l.b16 %v746
        %v781 = vunpack.c.l.b16 %v747
        %v782 = vunpack.c.l.b16 %v748
        %v783 = vunpack.c.l.b16 %v749
        %v784 = vpack.c.b16 %v781, %v780
        %v785 = vpack.c.b16 %v783, %v782
        %v787 = vsel %vm560, %v784, 0
        %v790 = vsel %vm560, %v785, 0
        %792 = vmatpush.bf16.msra.mxu0 0
        %793 = vmatpush.bf16.msra.mxu0 0
        %794 = vmatpush.bf16.msra.mxu0 0
        %795 = vmatpush.bf16.msra.mxu0 0
        %796 = vmatpush.bf16.msra.mxu0 0
        %797 = vmatpush.bf16.msra.mxu0 0
        %798 = vmatpush.bf16.msra.mxu0 %v751
        %799 = vmatpush.bf16.msra.mxu0 %v750
        %800 = vmatmul.bf16.gmra.mxu0 %v787
        %v801 = vpop.f32.mrf.mxu0
        %v802 = vadd.f32 %v759, %v801
        %v803 = vpop.f32.mrf.mxu0
        %v804 = vadd.f32 %v764, %v803
        %805 = vmatmul.bf16.gmra.mxu0 %v790
        %v806 = vpop.f32.mrf.mxu0
        %v807 = vadd.f32 %v769, %v806
        %v808 = vpop.f32.mrf.mxu0
        %v809 = vadd.f32 %v774, %v808
        %810 = vdwg.mxu0
        %v811 = vmax.f32 %v802, 0.0
        %v812 = vmax.f32 %v804, 0.0
        %v813 = vmax.f32 %v807, 0.0
        %v814 = vmax.f32 %v809, 0.0
        %815 = vst [vmem:[%s509] sm:$0xff] %v811
        %816 = vst [vmem:[%s509 + $0x8] sm:$0xff] %v812
        %817 = vst [vmem:[%s509 + $0x10] sm:$0xff] %v813
        %818 = vst [vmem:[%s509 + $0x18] sm:$0xff] %v814
        %s819 = sand.u32 %s277, 1
        %s820 = scalar_lea.sflag [#allocation5], %s819
        %s821 = sand.u32 %s277, 1
        %s822 = smul.addr %s821, 32
        %s823 = scalar_lea.vmem [#allocation9], %s822
        // Predicated region
        $region111: #{tpu_custom_call.1} parent=93 // pred_check
          %p824 = pneg %p287
        $region112: #{tpu_custom_call.1} parent=93 // pred_check_branch
          %826 = sbr.rel (%p824) target = $region114
        $region113: #{tpu_custom_call.1} parent=93 // pred_region
          %828 = vsyncadd %s820, 0
          %s829 = smul.addr %s32, 8
          %s830 = sadd.s32 %s33, %s829
          %s831 = smul.addr %s830, 8
          %s832 = scalar_lea.hbm %s10, %s831
          %s833 = sshll.u32 %s823, 4
          %s834 = int_to_ptr.vmem [resolvable:$true] %s833
          %s835 = sshll.u32 %s832, 4
          %s836 = int_to_ptr.hbm [resolvable:$true] %s835
          %841 = dma.vmem_to_hbm [thread:$0]  %s834, 512, %s836, %s820, 128, 256, 8
        $region114: #{tpu_custom_call.1} parent=93 // pred_fallthru
          _
      $region94: #{tpu_custom_call.1} parent=5 // pred_fallthru
        _
      %p842 = scmp.le.s32.totalorder 2, %s23
      // Predicated region
      $region115: #{tpu_custom_call.1} parent=5 // pred_check
        %p843 = pneg %p842
      $region116: #{tpu_custom_call.1} parent=5 // pred_check_branch
        %845 = sbr.rel (%p843) target = $region118
      $region117: #{tpu_custom_call.1} parent=5 // pred_region
        %s846 = ssub.s32 %s23, 2
        // Predicated region
        $region119: #{tpu_custom_call.1} parent=117 // pred_check
          %p847 = pneg %p293
        $region120: #{tpu_custom_call.1} parent=117 // pred_check_branch
          %849 = sbr.rel (%p847) target = $region122
        $region121: #{tpu_custom_call.1} parent=117 // pred_region
          %s850 = sand.u32 %s278, 1
          %s851 = scalar_lea.sflag [#allocation5], %s850
          %s852 = sand.u32 %s278, 1
          %s853 = smul.addr %s852, 32
          %s854 = scalar_lea.vmem [#allocation9], %s853
          %856 = dma.done %s851, 512
        $region122: #{tpu_custom_call.1} parent=117 // pred_fallthru
          _
      $region118: #{tpu_custom_call.1} parent=5 // pred_fallthru
        _
    $region6: #{tpu_custom_call.1} parent=1 // loop_footer
      %s27 = sadd.s32 1, %s23
    $region7: #{tpu_custom_call.1} parent=1 // loop_footer_branch
      %22 = sbr.rel target = $region3
    $region8: #{tpu_custom_call.1} parent=1 // loop_exit
      _
    %857 = vsyncpa [#allocation4], 1
    %s858 = scalar_lea.sflag [#allocation4], 1
    %859 = vsyncpa %s858, 1
    %860 = vsyncpa [#allocation7], 1
    %861 = vsyncpa [#allocation5], 1
    %s862 = scalar_lea.sflag [#allocation5], 1
    %863 = vsyncpa %s862, 1

</llo_original>
